<compile_context>
chip_gen: v6e
topology: v6e:2x2x1
jax: 0.10.0
libtpu: 0.0.40
codegen_flags: <defaults>
</compile_context>

<pallas_src>
import functools
import jax
import jax.numpy as jnp
from jax.experimental import pallas as pl
from jax.experimental.pallas import tpu as pltpu


def sublayer_connection_kernel(*refs, eps, keep_threshold, inv_keep, apply_dropout):
    """Fused LayerNorm -> Linear (example sublayer) -> Dropout -> residual add."""
    if apply_dropout:
        x_ref, gamma_ref, beta_ref, w_ref, b_ref, bits_ref, o_ref = refs
    else:
        x_ref, gamma_ref, beta_ref, w_ref, b_ref, o_ref = refs
        bits_ref = None

    x = x_ref[...].astype(jnp.float32)                       # (TM, H)

    # --- LayerNorm over the last (lane) axis, f32 math ---
    mean = jnp.mean(x, axis=-1, keepdims=True)
    xc = x - mean
    var = jnp.mean(xc * xc, axis=-1, keepdims=True)
    inv = jax.lax.rsqrt(var + eps)                            # (TM, 1)
    scale = inv * gamma_ref[...].astype(jnp.float32)          # fold gamma into inv
    ln = xc * scale + beta_ref[...].astype(jnp.float32)

    # --- example sublayer: Linear(H, H) on the MXU ---
    # Feed the MXU in the weight's native dtype; accumulate in f32.
    y = jnp.dot(ln.astype(w_ref.dtype), w_ref[...],
                preferred_element_type=jnp.float32)
    y = y + b_ref[...].astype(jnp.float32)

    # --- Dropout (inverted scaling, like torch training mode) ---
    if apply_dropout:
        bits = bits_ref[...]                                  # uint32 (TM, H)
        keep = bits >= jnp.uint32(keep_threshold)
        y = jnp.where(keep, y * inv_keep, 0.0)
    # TODO(synk): dropout mask is drawn from jax.random in the wrapper, so it
    # matches torch only in distribution, not bit-for-bit.

    # --- residual ---
    o_ref[...] = (x + y).astype(o_ref.dtype)


def _round_up(n, m):
    return ((n + m - 1) // m) * m


def sublayer_connection(x, gamma, beta, w, b, *, seed=0, p=0.1, eps=1e-5,
                        training=True, tile_rows=256):
    """x: (..., H).  gamma/beta: LayerNorm params (H,).  w,b: example sublayer Linear."""
    orig_shape = x.shape
    H = orig_shape[-1]
    x2 = x.reshape(-1, H)
    R = x2.shape[0]

    # Pick a row tile: large for throughput, but no bigger than the (padded)
    # row count; always a multiple of 8 (sublane granularity).
    tile = min(int(tile_rows), _round_up(R, 8))
    tile = _round_up(tile, 8)
    R_pad = _round_up(R, tile)
    if R_pad != R:
        x2 = jnp.pad(x2, ((0, R_pad - R), (0, 0)))

    apply_dropout = bool(training) and float(p) > 0.0
    keep_threshold = min(int(round(float(p) * float(2**32))), 2**32 - 1)
    inv_keep = 1.0 / (1.0 - float(p)) if apply_dropout else 1.0

    kernel = functools.partial(
        sublayer_connection_kernel,
        eps=float(eps),
        keep_threshold=keep_threshold,
        inv_keep=float(inv_keep),
        apply_dropout=apply_dropout,
    )

    in_specs = [
        pl.BlockSpec((tile, H), lambda i: (i, 0)),   # x tile (streams)
        pl.BlockSpec((1, H),    lambda i: (0, 0)),   # gamma (resident)
        pl.BlockSpec((1, H),    lambda i: (0, 0)),   # beta  (resident)
        pl.BlockSpec((H, H),    lambda i: (0, 0)),   # W     (resident)
        pl.BlockSpec((1, H),    lambda i: (0, 0)),   # b     (resident)
    ]
    args = [x2, gamma.reshape(1, H), beta.reshape(1, H), w, b.reshape(1, H)]

    if apply_dropout:
        bits = jax.random.bits(jax.random.PRNGKey(seed), (R_pad, H), jnp.uint32)
        in_specs.append(pl.BlockSpec((tile, H), lambda i: (i, 0)))  # dropout bits
        args.append(bits)

    out = pl.pallas_call(
        kernel,
        out_shape=jax.ShapeDtypeStruct((R_pad, H), x.dtype),
        grid=(R_pad // tile,),
        in_specs=in_specs,
        out_specs=pl.BlockSpec((tile, H), lambda i: (i, 0)),
        compiler_params=pltpu.CompilerParams(
            dimension_semantics=("parallel",),
            vmem_limit_bytes=64 * 1024 * 1024,
        ),
    )(*args)

    if R_pad != R:
        out = out[:R]
    return out.reshape(orig_shape)


def _reference_eval(x, gamma, beta, w, b, eps=1e-5):
    """Pure-JAX reference with dropout in eval mode (identity)."""
    mean = jnp.mean(x, axis=-1, keepdims=True)
    var = jnp.mean((x - mean) ** 2, axis=-1, keepdims=True)
    ln = (x - mean) / jnp.sqrt(var + eps) * gamma + beta
    return x + (ln @ w + b)


if __name__ == "__main__":
    key = jax.random.PRNGKey(0)
    B, S, H = 2, 8, 128
    kx, kw, kb = jax.random.split(key, 3)

    x = jax.random.normal(kx, (B, S, H), dtype=jnp.float32)
    # nn.LayerNorm(size) default init: weight=1, bias=0
    gamma = jnp.ones((H,), jnp.float32)
    beta = jnp.zeros((H,), jnp.float32)
    # deterministic init for the example sublayer Linear(H, H)
    w = (jax.random.normal(kw, (H, H), jnp.float32) / jnp.sqrt(H)).astype(jnp.float32)
    b = (jax.random.normal(kb, (H,), jnp.float32) * 0.01).astype(jnp.float32)

    # 1) eval-mode run (dropout = identity): check against pure-JAX reference
    out_eval = sublayer_connection(x, gamma, beta, w, b, p=0.1, training=False)
    out_eval = jax.block_until_ready(out_eval)
    ref = _reference_eval(x, gamma, beta, w, b)
    assert jnp.allclose(out_eval, ref, atol=1e-4, rtol=1e-4), "eval-mode mismatch"

    # 2) training-mode run (stochastic dropout, mask drawn in the wrapper)
    out_train = sublayer_connection(x, gamma, beta, w, b, seed=0, p=0.1, training=True)
    out_train = jax.block_until_ready(out_train)
    assert out_train.shape == x.shape and out_train.dtype == x.dtype
    assert bool(jnp.all(jnp.isfinite(out_train)))

    print("KERNEL_OK")
</pallas_src>

<mosaic_0001>
module attributes {stable_mosaic.version = 11 : i64} {
  func.func @sublayer_connection_kernel(%arg0: i32, %arg1: memref<16x128xf32, #tpu.memory_space<vmem>>, %arg2: memref<1x128xf32, #tpu.memory_space<vmem>>, %arg3: memref<1x128xf32, #tpu.memory_space<vmem>>, %arg4: memref<128x128xf32, #tpu.memory_space<vmem>>, %arg5: memref<1x128xf32, #tpu.memory_space<vmem>>, %arg6: memref<16x128xf32, #tpu.memory_space<vmem>>) attributes {dimension_semantics = [#tpu.dimension_semantics<parallel>], iteration_bounds = array<i64: 1>, scalar_prefetch = 0 : i64, scratch_operands = 0 : i64, tpu.core_type = #tpu.core_type<tc>, window_params = [{transform_indices = @transform_0, window_bounds = array<i64: 16, 128>}, {pipeline_mode = #tpu.pipeline_mode<synchronous>, transform_indices = @transform_1, window_bounds = array<i64: 1, 128>}, {pipeline_mode = #tpu.pipeline_mode<synchronous>, transform_indices = @transform_2, window_bounds = array<i64: 1, 128>}, {pipeline_mode = #tpu.pipeline_mode<synchronous>, transform_indices = @transform_3, window_bounds = array<i64: 128, 128>}, {pipeline_mode = #tpu.pipeline_mode<synchronous>, transform_indices = @transform_4, window_bounds = array<i64: 1, 128>}, {transform_indices = @transform_5, window_bounds = array<i64: 16, 128>}]} {
    %c0 = arith.constant 0 : index
    %c0_0 = arith.constant 0 : index
    %0 = vector.load %arg1[%c0, %c0_0] : memref<16x128xf32, #tpu.memory_space<vmem>>, vector<16x128xf32>
    %cst = arith.constant dense<0.000000e+00> : vector<16xf32>
    %1 = vector.multi_reduction <add>, %0, %cst [1] : vector<16x128xf32> to vector<16xf32>
    %2 = vector.shape_cast %1 : vector<16xf32> to vector<16x1xf32>
    %cst_1 = arith.constant 1.280000e+02 : f32
    %3 = vector.broadcast %cst_1 : f32 to vector<16x1xf32>
    %4 = arith.divf %2, %3 : vector<16x1xf32>
    %5 = vector.broadcast %4 : vector<16x1xf32> to vector<16x128xf32>
    %6 = arith.subf %0, %5 : vector<16x128xf32>
    %7 = arith.mulf %6, %6 : vector<16x128xf32>
    %cst_2 = arith.constant dense<0.000000e+00> : vector<16xf32>
    %8 = vector.multi_reduction <add>, %7, %cst_2 [1] : vector<16x128xf32> to vector<16xf32>
    %9 = vector.shape_cast %8 : vector<16xf32> to vector<16x1xf32>
    %cst_3 = arith.constant 1.280000e+02 : f32
    %10 = vector.broadcast %cst_3 : f32 to vector<16x1xf32>
    %11 = arith.divf %9, %10 : vector<16x1xf32>
    %cst_4 = arith.constant 9.99999974E-6 : f32
    %12 = vector.broadcast %cst_4 : f32 to vector<16x1xf32>
    %13 = arith.addf %11, %12 : vector<16x1xf32>
    %14 = math.rsqrt %13 : vector<16x1xf32>
    %c0_5 = arith.constant 0 : index
    %c0_6 = arith.constant 0 : index
    %15 = vector.load %arg2[%c0_5, %c0_6] : memref<1x128xf32, #tpu.memory_space<vmem>>, vector<1x128xf32>
    %16 = vector.broadcast %14 : vector<16x1xf32> to vector<16x128xf32>
    %17 = vector.broadcast %15 : vector<1x128xf32> to vector<16x128xf32>
    %18 = arith.mulf %16, %17 : vector<16x128xf32>
    %19 = arith.mulf %6, %18 : vector<16x128xf32>
    %c0_7 = arith.constant 0 : index
    %c0_8 = arith.constant 0 : index
    %20 = vector.load %arg3[%c0_7, %c0_8] : memref<1x128xf32, #tpu.memory_space<vmem>>, vector<1x128xf32>
    %21 = vector.broadcast %20 : vector<1x128xf32> to vector<16x128xf32>
    %22 = arith.addf %19, %21 : vector<16x128xf32>
    %c0_9 = arith.constant 0 : index
    %c0_10 = arith.constant 0 : index
    %23 = vector.load %arg4[%c0_9, %c0_10] : memref<128x128xf32, #tpu.memory_space<vmem>>, vector<128x128xf32>
    %cst_11 = arith.constant dense<0.000000e+00> : vector<16x128xf32>
    %24 = tpu.matmul %22, %23, %cst_11 {dimension_numbers = #tpu.dot_dimension_numbers<[1], [0], [0], [1], [0, 0, 1, 1], [], []>} : vector<16x128xf32>, vector<128x128xf32>, vector<16x128xf32> -> vector<16x128xf32>
    %c0_12 = arith.constant 0 : index
    %c0_13 = arith.constant 0 : index
    %25 = vector.load %arg5[%c0_12, %c0_13] : memref<1x128xf32, #tpu.memory_space<vmem>>, vector<1x128xf32>
    %26 = vector.broadcast %25 : vector<1x128xf32> to vector<16x128xf32>
    %27 = arith.addf %24, %26 : vector<16x128xf32>
    %28 = arith.addf %0, %27 : vector<16x128xf32>
    %c0_14 = arith.constant 0 : index
    %c0_15 = arith.constant 0 : index
    %29 = vector.load %arg6[%c0_14, %c0_15] : memref<16x128xf32, #tpu.memory_space<vmem>>, vector<16x128xf32>
    tpu.vector_store %arg6[%c0_14, %c0_15], %28 {strides = array<i32>} : memref<16x128xf32, #tpu.memory_space<vmem>>, vector<16x128xf32>,
    return
  }
  func.func @transform_0(%arg0: i32) -> (i32, i32) {
    %c0_i32 = arith.constant 0 : i32
    %c0_i32_0 = arith.constant 0 : i32
    return %arg0, %c0_i32 : i32, i32
  }
  func.func @transform_1(%arg0: i32) -> (i32, i32) {
    %c0_i32 = arith.constant 0 : i32
    %c0_i32_0 = arith.constant 0 : i32
    %c0_i32_1 = arith.constant 0 : i32
    return %c0_i32, %c0_i32_0 : i32, i32
  }
  func.func @transform_2(%arg0: i32) -> (i32, i32) {
    %c0_i32 = arith.constant 0 : i32
    %c0_i32_0 = arith.constant 0 : i32
    %c0_i32_1 = arith.constant 0 : i32
    return %c0_i32, %c0_i32_0 : i32, i32
  }
  func.func @transform_3(%arg0: i32) -> (i32, i32) {
    %c0_i32 = arith.constant 0 : i32
    %c0_i32_0 = arith.constant 0 : i32
    %c0_i32_1 = arith.constant 0 : i32
    return %c0_i32, %c0_i32_0 : i32, i32
  }
  func.func @transform_4(%arg0: i32) -> (i32, i32) {
    %c0_i32 = arith.constant 0 : i32
    %c0_i32_0 = arith.constant 0 : i32
    %c0_i32_1 = arith.constant 0 : i32
    return %c0_i32, %c0_i32_0 : i32, i32
  }
  func.func @transform_5(%arg0: i32) -> (i32, i32) {
    %c0_i32 = arith.constant 0 : i32
    %c0_i32_0 = arith.constant 0 : i32
    return %arg0, %c0_i32 : i32, i32
  }
}

</mosaic_0001>

<llo_original>
// kernel: tpu_custom_call.1
$region0: #{tpu_custom_call.1}
  #allocation0 [shape = 'u32[]', space=smem, size = 0x4, offset = 0x4, fixed_abs, tag = 'smem constant byte address 0x4 - core index']
  #allocation1 [shape = 'u32[144,128]{1,0:T(1,128)}', space=vmem, size = 0x12000, scoped, tag = 'internal scratch']
  %s0 = inlined_call_operand.hbm [shape: f32[16,128], index: 0, kind: input, shape index: {}]
  %s1 = inlined_call_operand.vmem [shape: f32[1,128], index: 1, kind: input, shape index: {}]
  %s2 = inlined_call_operand.vmem [shape: f32[1,128], index: 2, kind: input, shape index: {}]
  %s3 = inlined_call_operand.hbm [shape: f32[128,128], index: 3, kind: input, shape index: {}]
  %s4 = inlined_call_operand.vmem [shape: f32[1,128], index: 4, kind: input, shape index: {}]
  %s5 = inlined_call_operand.hbm [shape: f32[16,128], index: 5, kind: output, shape index: {}]
  %s6 = sld [smem:[#allocation0]]
  $region38: #{tpu_custom_call.1} parent=0
    _
  %s8 = ssub.s32 1, %s6
  %s9 = scalar_select 0, %s8, %s6
  $region1: #{tpu_custom_call.1} parent=0
    #allocation2 [shape = 'u8[8192]{0}', space=vmem, size = 0x2000, scoped, tag = 'input window, operand 0, single buffered']
    #allocation3 [shape = 's32[1]{0}', space=sflag, size = 0x4, scoped, tag = 'scoped memory for tpu_custom_call.1']
    #allocation4 [shape = 's32[1]{0}', space=sflag, size = 0x4, scoped, tag = 'scoped memory for tpu_custom_call.1']
    #allocation5 [shape = 'u8[65536]{0}', space=vmem, size = 0x10000, scoped, tag = 'input window, operand 3, single buffered']
    #allocation6 [shape = 's32[1]{0}', space=sflag, size = 0x4, scoped, tag = 'scoped memory for tpu_custom_call.1']
    #allocation7 [shape = 'u8[8192]{0}', space=vmem, size = 0x2000, scoped, tag = 'output window, operand 0, single buffered']
    %10 = vsyncpa [#allocation3], 0
    %11 = vsyncpa [#allocation6], 0
    %12 = vsyncpa [#allocation4], 0
    // Predicated region
    $region2: #{tpu_custom_call.1} parent=1 // pred_check
      _
    $region3: #{tpu_custom_call.1} parent=1 // pred_check_branch
      %14 = sbr.rel (0) target = $region5
    $region4: #{tpu_custom_call.1} parent=1 // pred_region
      %s16 = ssub.s32 256, 256
      %17 = vsyncadd [#allocation3], %s16
      %s18 = sshll.u32 [#allocation2], 4
      %s19 = int_to_ptr.vmem [resolvable:$true] %s18
      %24 = dma.hbm_to_vmem [thread:$0]  %s0, 256, %s19, [#allocation3], 128, 128, 8
    $region5: #{tpu_custom_call.1} parent=1 // pred_fallthru
      _
    // Predicated region
    $region6: #{tpu_custom_call.1} parent=1 // pred_check
      _
    $region7: #{tpu_custom_call.1} parent=1 // pred_check_branch
      %26 = sbr.rel (0) target = $region9
    $region8: #{tpu_custom_call.1} parent=1 // pred_region
      _
    $region9: #{tpu_custom_call.1} parent=1 // pred_fallthru
      _
    // Predicated region
    $region10: #{tpu_custom_call.1} parent=1 // pred_check
      _
    $region11: #{tpu_custom_call.1} parent=1 // pred_check_branch
      %28 = sbr.rel (0) target = $region13
    $region12: #{tpu_custom_call.1} parent=1 // pred_region
      _
    $region13: #{tpu_custom_call.1} parent=1 // pred_fallthru
      _
    // Predicated region
    $region14: #{tpu_custom_call.1} parent=1 // pred_check
      _
    $region15: #{tpu_custom_call.1} parent=1 // pred_check_branch
      %30 = sbr.rel (0) target = $region17
    $region16: #{tpu_custom_call.1} parent=1 // pred_region
      %s32 = ssub.s32 2048, 2048
      %33 = vsyncadd [#allocation6], %s32
      %s34 = sshll.u32 [#allocation5], 4
      %s35 = int_to_ptr.vmem [resolvable:$true] %s34
      %40 = dma.hbm_to_vmem [thread:$0]  %s3, 2048, %s35, [#allocation6], 128, 128, 8
    $region17: #{tpu_custom_call.1} parent=1 // pred_fallthru
      _
    // Predicated region
    $region18: #{tpu_custom_call.1} parent=1 // pred_check
      _
    $region19: #{tpu_custom_call.1} parent=1 // pred_check_branch
      %42 = sbr.rel (0) target = $region21
    $region20: #{tpu_custom_call.1} parent=1 // pred_region
      _
    $region21: #{tpu_custom_call.1} parent=1 // pred_fallthru
      _
    // Predicated region
    $region22: #{tpu_custom_call.1} parent=1 // pred_check
      _
    $region23: #{tpu_custom_call.1} parent=1 // pred_check_branch
      %44 = sbr.rel (0) target = $region25
    $region24: #{tpu_custom_call.1} parent=1 // pred_region
      %45 = dma.done [#allocation3], 256
    $region25: #{tpu_custom_call.1} parent=1 // pred_fallthru
      _
    // Predicated region
    $region26: #{tpu_custom_call.1} parent=1 // pred_check
      _
    $region27: #{tpu_custom_call.1} parent=1 // pred_check_branch
      %47 = sbr.rel (0) target = $region29
    $region28: #{tpu_custom_call.1} parent=1 // pred_region
      %48 = dma.done [#allocation6], 2048
    $region29: #{tpu_custom_call.1} parent=1 // pred_fallthru
      _
    %v49 = vld [vmem:[#allocation2] sm:$0xff]
    %v50 = vld [vmem:[#allocation2 + $0x8] sm:$0xff]
    %51 = vadd.xlane.f32.xlu0 %v49
    %v52 = vpop.xlane.xlu0 %51
    %53 = vadd.xlane.f32.xlu0 %v50
    %v54 = vpop.xlane.xlu0 %53
    %v55 = vrcp.pop 128.0
    %v56 = vmul.f32 %v52, %v55
    %v57 = vmul.f32 %v54, %v55
    %v58 = vsub.f32 %v49, %v56
    %v59 = vsub.f32 %v50, %v57
    %v60 = vmul.f32 %v58, %v58
    %v61 = vmul.f32 %v59, %v59
    %62 = vadd.xlane.f32.xlu0 %v60
    %v63 = vpop.xlane.xlu0 %62
    %64 = vadd.xlane.f32.xlu0 %v61
    %v65 = vpop.xlane.xlu0 %64
    %v66 = vmul.f32 %v63, %v55
    %v67 = vmul.f32 %v65, %v55
    %v68 = vadd.f32 %v66, 1e-05
    %v69 = vadd.f32 %v67, 1e-05
    %v70 = vrsqrt.pop %v68
    %v71 = vrsqrt.pop %v69
    %v72 = vld [vmem:[%s1] sm:$0x1]
    %v74 = vlaneseq
    %v75 = vshrl.u32 %v74, 7
    %v76 = vsub.s32 0, %v75
    %v77 = vrot.slane %v72, %v76
    %v79 = vmul.f32 %v70, %v77
    %v80 = vmul.f32 %v71, %v77
    %v81 = vmul.f32 %v58, %v79
    %v82 = vmul.f32 %v59, %v80
    %v83 = vld [vmem:[%s2] sm:$0x1]
    %v85 = vlaneseq
    %v86 = vshrl.u32 %v85, 7
    %v87 = vsub.s32 0, %v86
    %v88 = vrot.slane %v83, %v87
    %v90 = vadd.f32 %v81, %v88
    %v91 = vadd.f32 %v82, %v88
    %v92 = vld [vmem:[#allocation5] sm:$0xff]
    %v93 = vld [vmem:[#allocation5 + $0x8] sm:$0xff]
    %v94 = vld [vmem:[#allocation5 + $0x10] sm:$0xff]
    %v95 = vld [vmem:[#allocation5 + $0x18] sm:$0xff]
    %v96 = vld [vmem:[#allocation5 + $0x20] sm:$0xff]
    %v97 = vld [vmem:[#allocation5 + $0x28] sm:$0xff]
    %v98 = vld [vmem:[#allocation5 + $0x30] sm:$0xff]
    %v99 = vld [vmem:[#allocation5 + $0x38] sm:$0xff]
    %v100 = vld [vmem:[#allocation5 + $0x40] sm:$0xff]
    %v101 = vld [vmem:[#allocation5 + $0x48] sm:$0xff]
    %v102 = vld [vmem:[#allocation5 + $0x50] sm:$0xff]
    %v103 = vld [vmem:[#allocation5 + $0x58] sm:$0xff]
    %v104 = vld [vmem:[#allocation5 + $0x60] sm:$0xff]
    %v105 = vld [vmem:[#allocation5 + $0x68] sm:$0xff]
    %v106 = vld [vmem:[#allocation5 + $0x70] sm:$0xff]
    %v107 = vld [vmem:[#allocation5 + $0x78] sm:$0xff]
    %v108 = vld [vmem:[%s4] sm:$0x1]
    %v110 = vlaneseq
    %v111 = vshrl.u32 %v110, 7
    %v112 = vsub.s32 0, %v111
    %v113 = vrot.slane %v108, %v112
    %115 = vmatprep.subr.mxu0 0.0
    %116 = vmatpush1.msra.mxu0 %v107
    %117 = vmatprep.subr.mxu0 0.0
    %118 = vmatpush1.msra.mxu0 %v106
    %119 = vmatprep.subr.mxu0 0.0
    %120 = vmatpush1.msra.mxu0 %v105
    %121 = vmatprep.subr.mxu0 0.0
    %122 = vmatpush1.msra.mxu0 %v104
    %123 = vmatprep.subr.mxu0 0.0
    %124 = vmatpush1.msra.mxu0 %v103
    %125 = vmatprep.subr.mxu0 0.0
    %126 = vmatpush1.msra.mxu0 %v102
    %127 = vmatprep.subr.mxu0 0.0
    %128 = vmatpush1.msra.mxu0 %v101
    %129 = vmatprep.subr.mxu0 0.0
    %130 = vmatpush1.msra.mxu0 %v100
    %131 = vmatprep.subr.mxu0 0.0
    %132 = vmatpush1.msra.mxu0 %v99
    %133 = vmatprep.subr.mxu0 0.0
    %134 = vmatpush1.msra.mxu0 %v98
    %135 = vmatprep.subr.mxu0 0.0
    %136 = vmatpush1.msra.mxu0 %v97
    %137 = vmatprep.subr.mxu0 0.0
    %138 = vmatpush1.msra.mxu0 %v96
    %139 = vmatprep.subr.mxu0 0.0
    %140 = vmatpush1.msra.mxu0 %v95
    %141 = vmatprep.subr.mxu0 0.0
    %142 = vmatpush1.msra.mxu0 %v94
    %143 = vmatprep.subr.mxu0 0.0
    %144 = vmatpush1.msra.mxu0 %v93
    %145 = vmatprep.subr.mxu0 0.0
    %146 = vmatpush1.msra.mxu0 %v92
    %147 = vmatprep.subr.mxu0 0.0
    %148 = vmatpush2.msra.mxu0 0.0
    %149 = vmatprep.subr.mxu0 0.0
    %150 = vmatpush2.msra.mxu0 0.0
    %151 = vmatprep.subr.mxu0 0.0
    %152 = vmatpush2.msra.mxu0 0.0
    %153 = vmatprep.subr.mxu0 0.0
    %154 = vmatpush2.msra.mxu0 0.0
    %155 = vmatprep.subr.mxu0 0.0
    %156 = vmatpush2.msra.mxu0 0.0
    %157 = vmatprep.subr.mxu0 0.0
    %158 = vmatpush2.msra.mxu0 0.0
    %159 = vmatprep.subr.mxu0 0.0
    %160 = vmatpush2.msra.mxu0 0.0
    %161 = vmatprep.subr.mxu0 0.0
    %162 = vmatpush2.msra.mxu0 0.0
    %163 = vmatprep.subr.mxu0 0.0
    %164 = vmatpush2.msra.mxu0 0.0
    %165 = vmatprep.subr.mxu0 0.0
    %166 = vmatpush2.msra.mxu0 0.0
    %167 = vmatprep.subr.mxu0 0.0
    %168 = vmatpush2.msra.mxu0 0.0
    %169 = vmatprep.subr.mxu0 0.0
    %170 = vmatpush2.msra.mxu0 0.0
    %171 = vmatprep.subr.mxu0 0.0
    %172 = vmatpush2.msra.mxu0 0.0
    %173 = vmatprep.subr.mxu0 0.0
    %174 = vmatpush2.msra.mxu0 0.0
    %175 = vmatprep.subr.mxu0 0.0
    %176 = vmatpush2.msra.mxu0 0.0
    %177 = vmatprep.subr.mxu0 0.0
    %178 = vmatpush2.msra.mxu0 0.0
    %179 = vmatprep.mubr.f32.mxu0 0.0
    %180 = vmatmul.mubr.f32.gmra.mxu0 %v90
    %v181 = vpop.f32.mrf.mxu0
    %v182 = vadd.f32 %v113, %v181
    %v183 = vpop.f32.mrf.mxu0
    %184 = vmatprep.mubr.f32.mxu0 0.0
    %185 = vmatmul.mubr.f32.gmra.mxu0 %v91
    %v186 = vpop.f32.mrf.mxu0
    %v187 = vadd.f32 %v113, %v186
    %v188 = vpop.f32.mrf.mxu0
    %189 = vdwg.mxu0
    %v190 = vadd.f32 %v49, %v182
    %v191 = vadd.f32 %v50, %v187
    %192 = vst [vmem:[#allocation7] sm:$0xff] %v190
    %193 = vst [vmem:[#allocation7 + $0x8] sm:$0xff] %v191
    // Predicated region
    $region30: #{tpu_custom_call.1} parent=1 // pred_check
      _
    $region31: #{tpu_custom_call.1} parent=1 // pred_check_branch
      %195 = sbr.rel (0) target = $region33
    $region32: #{tpu_custom_call.1} parent=1 // pred_region
      %s197 = ssub.s32 256, 256
      %198 = vsyncadd [#allocation4], %s197
      %s199 = sshll.u32 [#allocation7], 4
      %s200 = int_to_ptr.vmem [resolvable:$true] %s199
      %205 = dma.vmem_to_hbm [thread:$0]  %s200, 256, %s5, [#allocation4], 128, 128, 8
    $region33: #{tpu_custom_call.1} parent=1 // pred_fallthru
      _
    // Predicated region
    $region34: #{tpu_custom_call.1} parent=1 // pred_check
      _
    $region35: #{tpu_custom_call.1} parent=1 // pred_check_branch
      %207 = sbr.rel (0) target = $region37
    $region36: #{tpu_custom_call.1} parent=1 // pred_region
      %208 = dma.done [#allocation4], 256
    $region37: #{tpu_custom_call.1} parent=1 // pred_fallthru
      _
    %209 = vsyncpa [#allocation3], 1
    %210 = vsyncpa [#allocation6], 1
    %211 = vsyncpa [#allocation4], 1

</llo_original>
